<compile_context>
chip_gen: v5e
topology: v5e:2x2
jax: 0.10.0
libtpu: 0.0.40
codegen_flags: <defaults>
</compile_context>

<pallas_src>
import jax
import jax.numpy as jnp
from jax.experimental import pallas as pl
from jax.experimental.pallas import tpu as pltpu

_LANES = 128
_SUBLANES = 8
# Max rows (sublane extent) of one input block: 4096 * 128 * 4 B = 2 MiB per buffer,
# double-buffered -> 4 MiB, comfortably inside scoped VMEM on v5e/v6e/v7x.
_MAX_BLOCK_ROWS = 4096


def _round_up(x, m):
    return ((x + m - 1) // m) * m


def _sumsq_kernel(xg_ref, out_ref):
    # xg_ref : (block_b, tile_rows, 128) tile of flattened gradients (block_b samples)
    # out_ref: (block_b, 1, 128) per-sample per-lane partial sums (resident across k)
    k = pl.program_id(1)
    x = xg_ref[...].astype(jnp.float32)
    s = jnp.sum(x * x, axis=1, keepdims=True)  # VPU square + XLU sublane reduce

    @pl.when(k == 0)
    def _first():
        out_ref[...] = s

    @pl.when(k > 0)
    def _rest():
        out_ref[...] += s


def gp_loss(d_output1, d_output2, x_grad, lamda=10.0, max_block_rows=_MAX_BLOCK_ROWS):
    """Pallas implementation of GP_loss.forward."""
    B = x_grad.shape[0]
    xg = x_grad.reshape(B, -1)
    N = xg.shape[1]

    rows = -(-N // _LANES)  # ceil(N / 128)

    if rows <= max_block_rows:
        # Whole sample fits in one block: single k step, tile_rows == full rows dim
        # (so it need not be a multiple of 8), and pack as many samples per block
        # as fit the VMEM budget (block_b must divide B — no batch padding copy).
        num_k = 1
        tile_rows = rows
        rows_padded = rows
        cap_b = max(1, max_block_rows // max(rows, 1))
        block_b = 1
        for d in range(min(B, cap_b), 0, -1):
            if B % d == 0:
                block_b = d
                break
    else:
        # Very large samples: one sample per block, split its rows along the
        # (last, "arbitrary") reduction axis of the grid.
        block_b = 1
        num_k = -(-rows // max_block_rows)
        tile_rows = _round_up(-(-rows // num_k), _SUBLANES)
        rows_padded = num_k * tile_rows

    total = rows_padded * _LANES
    if total != N:
        # Zero padding is safe: padded elements contribute 0 to the sum of squares.
        # TODO(synk): avoid this HBM copy for unaligned N via in-kernel iota masking.
        xg = jnp.pad(xg, ((0, 0), (0, total - N)))
    xg3 = xg.reshape(B, rows_padded, _LANES)

    itemsize = jnp.dtype(x_grad.dtype).itemsize

    partial = pl.pallas_call(
        _sumsq_kernel,
        out_shape=jax.ShapeDtypeStruct((B, 1, _LANES), jnp.float32),
        grid_spec=pltpu.PrefetchScalarGridSpec(
            num_scalar_prefetch=0,
            grid=(B // block_b, num_k),  # batch-blocks outer (parallel), reduction last
            in_specs=[
                pl.BlockSpec((block_b, tile_rows, _LANES), lambda b, k: (b, k, 0)),
            ],
            out_specs=pl.BlockSpec((block_b, 1, _LANES), lambda b, k: (b, 0, 0)),
        ),
        compiler_params=pltpu.CompilerParams(
            dimension_semantics=("parallel", "arbitrary"),
            vmem_limit_bytes=32 * 1024 * 1024,
        ),
        cost_estimate=pl.CostEstimate(
            flops=2 * B * rows_padded * _LANES,
            transcendentals=0,
            bytes_accessed=B * rows_padded * _LANES * itemsize + B * _LANES * 4,
        ),
    )(xg3)

    # Tiny O(B) epilogue in plain JAX (keeps the batch grid axis parallel).
    grad = jnp.sum(partial.reshape(B, _LANES), axis=-1)                  # (B,)
    tmp = lamda * (jnp.sqrt(grad) - 1.0) ** 2                            # (B,)
    d1 = d_output1.reshape(-1).astype(jnp.float32)
    d2 = d_output2.reshape(-1).astype(jnp.float32)
    return jnp.mean(d1 - d2 + tmp)


def _gp_loss_ref(d_output1, d_output2, x_grad, lamda=10.0):
    # pure-JAX reference mirroring the PyTorch forward
    grad = jnp.sum(x_grad.astype(jnp.float32) ** 2, axis=(1, 2, 3))
    tmp = lamda * (jnp.sqrt(grad) - 1.0) ** 2
    return jnp.mean(d_output1.reshape(-1).astype(jnp.float32)
                    - d_output2.reshape(-1).astype(jnp.float32) + tmp)


if __name__ == "__main__":
    # Case 1: lane-aligned shape (N = 4*16*16 = 1024, no padding, samples packed per block)
    B, C, H, W = 2, 4, 16, 16
    key = jax.random.PRNGKey(0)
    k1, k2, k3 = jax.random.split(key, 3)
    d_output1 = jax.random.normal(k1, (B,), dtype=jnp.float32)   # critic scores (real)
    d_output2 = jax.random.normal(k2, (B,), dtype=jnp.float32)   # critic scores (fake)
    x_grad = jax.random.normal(k3, (B, C, H, W), dtype=jnp.float32)

    loss = jax.block_until_ready(gp_loss(d_output1, d_output2, x_grad, lamda=10.0))
    ref = _gp_loss_ref(d_output1, d_output2, x_grad, lamda=10.0)
    assert jnp.allclose(loss, ref, rtol=1e-5, atol=1e-4), (loss, ref)

    # Case 2: exercise the zero-padding path (N = 3*15*17 = 765, not a multiple of 128)
    k4, k5, k6 = jax.random.split(k3, 3)
    B2, C2, H2, W2 = 2, 3, 15, 17
    d1b = jax.random.normal(k4, (B2,), dtype=jnp.float32)
    d2b = jax.random.normal(k5, (B2,), dtype=jnp.float32)
    xgb = jax.random.normal(k6, (B2, C2, H2, W2), dtype=jnp.float32)
    loss2 = jax.block_until_ready(gp_loss(d1b, d2b, xgb, lamda=10.0))
    ref2 = _gp_loss_ref(d1b, d2b, xgb, lamda=10.0)
    assert jnp.allclose(loss2, ref2, rtol=1e-5, atol=1e-4), (loss2, ref2)

    # Case 3: force the multi-k (split-sample) path with a small max_block_rows,
    # including an odd batch size (block_b falls back to 1).
    k7, k8, k9 = jax.random.split(k6, 3)
    B3, C3, H3, W3 = 3, 2, 40, 32   # N = 2560 -> rows = 20 > max_block_rows = 8
    d1c = jax.random.normal(k7, (B3,), dtype=jnp.float32)
    d2c = jax.random.normal(k8, (B3,), dtype=jnp.float32)
    xgc = jax.random.normal(k9, (B3, C3, H3, W3), dtype=jnp.float32)
    loss3 = jax.block_until_ready(gp_loss(d1c, d2c, xgc, lamda=10.0, max_block_rows=8))
    ref3 = _gp_loss_ref(d1c, d2c, xgc, lamda=10.0)
    assert jnp.allclose(loss3, ref3, rtol=1e-5, atol=1e-4), (loss3, ref3)

    print("KERNEL_OK")
</pallas_src>

<mosaic_0001>
module attributes {stable_mosaic.version = 11 : i64} {
  func.func @_sumsq_kernel(%arg0: i32, %arg1: i32, %arg2: memref<2x8x128xf32, #tpu.memory_space<vmem>>, %arg3: memref<2x1x128xf32, #tpu.memory_space<vmem>>) attributes {dimension_semantics = [#tpu.dimension_semantics<parallel>, #tpu.dimension_semantics<arbitrary>], iteration_bounds = array<i64: 1, 1>, scalar_prefetch = 0 : i64, scratch_operands = 0 : i64, tpu.core_type = #tpu.core_type<tc>, window_params = [{transform_indices = @transform_0, window_bounds = array<i64: 2, 8, 128>}, {transform_indices = @transform_1, window_bounds = array<i64: 2, 1, 128>}]} {
    %c0 = arith.constant 0 : index
    %c0_0 = arith.constant 0 : index
    %c0_1 = arith.constant 0 : index
    %0 = vector.load %arg2[%c0, %c0_0, %c0_1] : memref<2x8x128xf32, #tpu.memory_space<vmem>>, vector<2x8x128xf32>
    %1 = arith.mulf %0, %0 : vector<2x8x128xf32>
    %cst = arith.constant dense<0.000000e+00> : vector<2x128xf32>
    %2 = vector.multi_reduction <add>, %1, %cst [1] : vector<2x8x128xf32> to vector<2x128xf32>
    %3 = vector.shape_cast %2 : vector<2x128xf32> to vector<2x1x128xf32>
    %c0_i32 = arith.constant 0 : i32
    %4 = arith.cmpi eq, %arg1, %c0_i32 : i32
    %5 = arith.extui %4 : i1 to i32
    %c0_i32_2 = arith.constant 0 : i32
    %6 = arith.cmpi ne, %5, %c0_i32_2 : i32
    scf.if %6 {
      %c0_5 = arith.constant 0 : index
      %c0_6 = arith.constant 0 : index
      %c0_7 = arith.constant 0 : index
      %10 = vector.load %arg3[%c0_5, %c0_6, %c0_7] : memref<2x1x128xf32, #tpu.memory_space<vmem>>, vector<2x1x128xf32>
      tpu.vector_store %arg3[%c0_5, %c0_6, %c0_7], %3 {strides = array<i32>} : memref<2x1x128xf32, #tpu.memory_space<vmem>>, vector<2x1x128xf32>,
    } else {
    }
    %c0_i32_3 = arith.constant 0 : i32
    %7 = arith.cmpi sgt, %arg1, %c0_i32_3 : i32
    %8 = arith.extui %7 : i1 to i32
    %c0_i32_4 = arith.constant 0 : i32
    %9 = arith.cmpi ne, %8, %c0_i32_4 : i32
    scf.if %9 {
      %c0_5 = arith.constant 0 : index
      %c0_6 = arith.constant 0 : index
      %c0_7 = arith.constant 0 : index
      %10 = vector.load %arg3[%c0_5, %c0_6, %c0_7] : memref<2x1x128xf32, #tpu.memory_space<vmem>>, vector<2x1x128xf32>
      %11 = arith.addf %10, %3 : vector<2x1x128xf32>
      %c0_8 = arith.constant 0 : index
      %c0_9 = arith.constant 0 : index
      %c0_10 = arith.constant 0 : index
      %12 = vector.load %arg3[%c0_8, %c0_9, %c0_10] : memref<2x1x128xf32, #tpu.memory_space<vmem>>, vector<2x1x128xf32>
      tpu.vector_store %arg3[%c0_8, %c0_9, %c0_10], %11 {strides = array<i32>} : memref<2x1x128xf32, #tpu.memory_space<vmem>>, vector<2x1x128xf32>,
    } else {
    }
    return
  }
  func.func @transform_0(%arg0: i32, %arg1: i32) -> (i32, i32, i32) {
    %c0_i32 = arith.constant 0 : i32
    %c0_i32_0 = arith.constant 0 : i32
    return %arg0, %arg1, %c0_i32 : i32, i32, i32
  }
  func.func @transform_1(%arg0: i32, %arg1: i32) -> (i32, i32, i32) {
    %c0_i32 = arith.constant 0 : i32
    %c0_i32_0 = arith.constant 0 : i32
    %c0_i32_1 = arith.constant 0 : i32
    return %arg0, %c0_i32, %c0_i32_0 : i32, i32, i32
  }
}

</mosaic_0001>

<llo_original>
// kernel: tpu_custom_call.1
$region0: #{tpu_custom_call.1}
  #allocation0 [shape = 'u32[]', space=smem, size = 0x4, offset = 0x4, fixed_abs, tag = 'smem constant byte address 0x4 - core index']
  #allocation1 [shape = 'u32[72,128]{1,0:T(1,128)}', space=vmem, size = 0x9000, scoped, tag = 'internal scratch']
  %s0 = inlined_call_operand.hbm [shape: f32[2,8,128], index: 0, kind: input, shape index: {}]
  %s1 = inlined_call_operand.hbm [shape: f32[2,1,128], index: 1, kind: output, shape index: {}]
  %s2 = sld [smem:[#allocation0]]
  $region26: #{tpu_custom_call.1} parent=0
    _
  %s4 = ssub.s32 1, %s2
  %s5 = scalar_select 0, %s4, %s2
  $region1: #{tpu_custom_call.1} parent=0
    #allocation2 [shape = 'u8[8192]{0}', space=vmem, size = 0x2000, scoped, tag = 'input window, operand 0, single buffered']
    #allocation3 [shape = 's32[1]{0}', space=sflag, size = 0x4, scoped, tag = 'scoped memory for tpu_custom_call.1']
    #allocation4 [shape = 's32[1]{0}', space=sflag, size = 0x4, scoped, tag = 'scoped memory for tpu_custom_call.1']
    #allocation5 [shape = 'u8[1024]{0}', space=vmem, size = 0x400, scoped, tag = 'output window, operand 0, single buffered']
    %6 = vsyncpa [#allocation3], 0
    %7 = vsyncpa [#allocation4], 0
    // Predicated region
    $region2: #{tpu_custom_call.1} parent=1 // pred_check
      _
    $region3: #{tpu_custom_call.1} parent=1 // pred_check_branch
      %9 = sbr.rel (0) target = $region5
    $region4: #{tpu_custom_call.1} parent=1 // pred_region
      %11 = vsyncadd [#allocation3], 0
      %s12 = sshll.u32 %s0, 4
      %s13 = int_to_ptr.hbm [resolvable:$true] %s12
      %s14 = sshll.u32 [#allocation2], 4
      %s15 = int_to_ptr.vmem [resolvable:$true] %s14
      %20 = dma.hbm_to_vmem [thread:$0]  %s13, 256, %s15, [#allocation3], 128, 128, 8
    $region5: #{tpu_custom_call.1} parent=1 // pred_fallthru
      _
    // Predicated region
    $region6: #{tpu_custom_call.1} parent=1 // pred_check
      _
    $region7: #{tpu_custom_call.1} parent=1 // pred_check_branch
      %22 = sbr.rel (0) target = $region9
    $region8: #{tpu_custom_call.1} parent=1 // pred_region
      %24 = dma.done [#allocation3], 256
    $region9: #{tpu_custom_call.1} parent=1 // pred_fallthru
      _
    %v25 = vld [vmem:[#allocation2] sm:$0xff]
    %v26 = vld [vmem:[#allocation2 + $0x8] sm:$0xff]
    %v27 = vmul.f32 %v25, %v25
    %v28 = vmul.f32 %v26, %v26
    %v29 = vrot.slane %v27, 4
    %v30 = vadd.f32 %v27, %v29
    %v31 = vrot.slane %v30, 2
    %v32 = vadd.f32 %v30, %v31
    %v33 = vrot.slane %v32, 1
    %v34 = vadd.f32 %v32, %v33
    %v35 = vrot.slane %v28, 4
    %v36 = vadd.f32 %v28, %v35
    %v37 = vrot.slane %v36, 2
    %v38 = vadd.f32 %v36, %v37
    %v39 = vrot.slane %v38, 1
    %v40 = vadd.f32 %v38, %v39
    %p41 = scmp.eq.s32.totalorder 0, 0
    // Predicated region
    $region10: #{tpu_custom_call.1} parent=1 // pred_check
      %p42 = pneg %p41
    $region11: #{tpu_custom_call.1} parent=1 // pred_check_branch
      %44 = sbr.rel (%p42) target = $region13
    $region12: #{tpu_custom_call.1} parent=1 // pred_region
      %45 = vst [vmem:[#allocation5] sm:$0x1] %v34
      %46 = vst [vmem:[#allocation5 + $0x1] sm:$0x1] %v40
    $region13: #{tpu_custom_call.1} parent=1 // pred_fallthru
      _
    %p47 = scmp.gt.s32.totalorder 0, 0
    // Predicated region
    $region14: #{tpu_custom_call.1} parent=1 // pred_check
      %p48 = pneg %p47
    $region15: #{tpu_custom_call.1} parent=1 // pred_check_branch
      %50 = sbr.rel (%p48) target = $region17
    $region16: #{tpu_custom_call.1} parent=1 // pred_region
      %v51 = vld [vmem:[#allocation5] sm:$0x1]
      %v52 = vld [vmem:[#allocation5 + $0x1] sm:$0x1]
      %v53 = vadd.f32 %v51, %v34
      %v54 = vadd.f32 %v52, %v40
      %55 = vst [vmem:[#allocation5] sm:$0x1] %v53
      %56 = vst [vmem:[#allocation5 + $0x1] sm:$0x1] %v54
    $region17: #{tpu_custom_call.1} parent=1 // pred_fallthru
      _
    // Predicated region
    $region18: #{tpu_custom_call.1} parent=1 // pred_check
      _
    $region19: #{tpu_custom_call.1} parent=1 // pred_check_branch
      %58 = sbr.rel (0) target = $region21
    $region20: #{tpu_custom_call.1} parent=1 // pred_region
      %60 = vsyncadd [#allocation4], 0
      %s61 = sshll.u32 [#allocation5], 4
      %s62 = int_to_ptr.vmem [resolvable:$true] %s61
      %s63 = sshll.u32 %s1, 4
      %s64 = int_to_ptr.hbm [resolvable:$true] %s63
      %69 = dma.vmem_to_hbm [thread:$0]  %s62, 32, %s64, [#allocation4], 16, 16, 1
    $region21: #{tpu_custom_call.1} parent=1 // pred_fallthru
      _
    // Predicated region
    $region22: #{tpu_custom_call.1} parent=1 // pred_check
      _
    $region23: #{tpu_custom_call.1} parent=1 // pred_check_branch
      %71 = sbr.rel (0) target = $region25
    $region24: #{tpu_custom_call.1} parent=1 // pred_region
      %73 = dma.done [#allocation4], 32
    $region25: #{tpu_custom_call.1} parent=1 // pred_fallthru
      _
    %74 = vsyncpa [#allocation3], 1
    %75 = vsyncpa [#allocation4], 1

</llo_original>
